<compile_context>
chip_gen: v5e
topology: v5e:2x2
jax: 0.10.0
libtpu: 0.0.40
codegen_flags: <defaults>
</compile_context>

<pallas_src>
import functools

import jax
import jax.numpy as jnp
from jax.experimental import pallas as pl
from jax.experimental.pallas import tpu as pltpu


# ----------------------------------------------------------------------------
# Pallas kernels
# ----------------------------------------------------------------------------
def _odconv_mm_kernel(w_ref, x_ref, o_ref):
    # w_ref: (1, C_out, 9*C_in)  effective weights (all attentions pre-folded)
    # x_ref: (1, 9*C_in, H*W)    im2col'd input (tap-major, then channel)
    # o_ref: (1, C_out, H*W)     output, H*W on lanes (lane-dense stores)
    y = jnp.dot(w_ref[0], x_ref[0], preferred_element_type=jnp.float32)
    o_ref[0] = y.astype(o_ref.dtype)


def _odconv_mm_res_kernel(w_ref, x_ref, res_ref, o_ref):
    # Same as above, with the bottleneck residual fused into the output store.
    y = jnp.dot(w_ref[0], x_ref[0], preferred_element_type=jnp.float32)
    o_ref[0] = (y + res_ref[0]).astype(o_ref.dtype)


# ----------------------------------------------------------------------------
# Plain-JAX glue (tiny attention head, im2col layout prep)
# ----------------------------------------------------------------------------
def _attention_head(x, p):
    """Attention module forward (temperature=1, eval-mode BN). x: (b, Cin, H, W)."""
    pooled = jnp.mean(x, axis=(2, 3))                                   # AdaptiveAvgPool2d(1)
    a = pooled @ p["fc_w"].T                                            # 1x1 conv, no bias
    a = (a - p["bn_mean"]) * p["bn_gamma"] / jnp.sqrt(p["bn_var"] + 1e-5) + p["bn_beta"]
    a = jax.nn.relu(a)
    ch = jax.nn.sigmoid(a @ p["channel_w"].T + p["channel_b"])          # (b, Cin)
    fi = jax.nn.sigmoid(a @ p["filter_w"].T + p["filter_b"])           # (b, Cout)
    sp = jax.nn.sigmoid(a @ p["spatial_w"].T + p["spatial_b"])         # (b, k*k), t = dy*k+dx
    return ch, fi, sp


def _im2col_taps(x, k, pad):
    """(b, C, H, W) -> (b, k*k*C, H*W); row index = t*C + c with t = dy*k+dx."""
    b, c, h, w = x.shape
    xp = jnp.pad(x, ((0, 0), (0, 0), (pad, pad), (pad, pad)))
    taps = [xp[:, :, dy:dy + h, dx:dx + w].reshape(b, c, h * w)
            for dy in range(k) for dx in range(k)]
    return jnp.concatenate(taps, axis=1)


# ----------------------------------------------------------------------------
# ODConv2d forward (kernel_size=3, stride=1, groups=1, kernel_num=1, 'same' pad)
# ----------------------------------------------------------------------------
def odconv_forward(x, p, residual=None, k=3):
    b, c_in, h, w = x.shape
    c_out = p["weight"].shape[0]
    hw = h * w
    kk = k * k

    ch, fi, sp = _attention_head(x, p)

    # Fold attentions into per-batch effective weights (tiny tensor, done in the wrapper):
    #   w_eff[b, o, t*Cin + c] = weight[o, c, dy, dx] * sp[b, t] * ch[b, c] * fi[b, o]
    wt = jnp.transpose(p["weight"], (0, 2, 3, 1)).reshape(c_out, kk, c_in)   # (o, t, c)
    w_eff = (wt[None]
             * sp[:, None, :, None]
             * ch[:, None, None, :]
             * fi[:, :, None, None]).reshape(b, c_out, kk * c_in)

    x_cols = _im2col_taps(x, k, k // 2)                                       # (b, kk*Cin, HW)

    in_specs = [
        pl.BlockSpec((1, c_out, kk * c_in), lambda i: (i, 0, 0)),
        pl.BlockSpec((1, kk * c_in, hw), lambda i: (i, 0, 0)),
    ]
    args = [w_eff, x_cols]
    if residual is not None:
        in_specs.append(pl.BlockSpec((1, c_out, hw), lambda i: (i, 0, 0)))
        args.append(residual.reshape(b, c_out, hw))
        kernel = _odconv_mm_res_kernel
    else:
        kernel = _odconv_mm_kernel

    out = pl.pallas_call(
        kernel,
        out_shape=jax.ShapeDtypeStruct((b, c_out, hw), x.dtype),
        grid=(b,),
        in_specs=in_specs,
        out_specs=pl.BlockSpec((1, c_out, hw), lambda i: (i, 0, 0)),
        compiler_params=pltpu.CompilerParams(dimension_semantics=("parallel",)),
    )(*args)
    return out.reshape(b, c_out, h, w)


def bottleneck_odconv_forward(x, p_cv1, p_cv2, shortcut=True):
    c1 = x.shape[1]
    c2 = p_cv2["weight"].shape[0]
    add = shortcut and (c1 == c2)
    y = odconv_forward(x, p_cv1)
    return odconv_forward(y, p_cv2, residual=x if add else None)


# ----------------------------------------------------------------------------
# Pure-JAX reference (lax.conv, per-batch modulated weights) for validation
# ----------------------------------------------------------------------------
def _odconv_ref(x, p, residual=None, k=3):
    b = x.shape[0]
    ch, fi, sp = _attention_head(x, p)
    xs = x * ch[:, :, None, None]
    agg_w = p["weight"][None] * sp.reshape(b, 1, 1, k, k)

    def conv_one(xi, wi):
        return jax.lax.conv_general_dilated(
            xi[None], wi, window_strides=(1, 1),
            padding=((k // 2, k // 2), (k // 2, k // 2)),
            dimension_numbers=("NCHW", "OIHW", "NCHW"),
            precision=jax.lax.Precision.HIGHEST)[0]

    y = jax.vmap(conv_one)(xs, agg_w) * fi[:, :, None, None]
    return y + residual if residual is not None else y


def bottleneck_odconv_ref(x, p_cv1, p_cv2, shortcut=True):
    add = shortcut and (x.shape[1] == p_cv2["weight"].shape[0])
    y = _odconv_ref(x, p_cv1)
    return _odconv_ref(y, p_cv2, residual=x if add else None)


# ----------------------------------------------------------------------------
# Parameter initialization (kaiming-style weights, zero biases, default BN stats)
# ----------------------------------------------------------------------------
def _kaiming(key, shape, fan_out):
    return jax.random.normal(key, shape, jnp.float32) * jnp.sqrt(2.0 / fan_out)


def init_odconv_params(key, c_in, c_out, k=3, reduction=0.0625, min_channel=16):
    a_ch = max(int(c_in * reduction), min_channel)
    ks = jax.random.split(key, 5)
    return dict(
        weight=_kaiming(ks[0], (c_out, c_in, k, k), fan_out=c_out * k * k),
        fc_w=_kaiming(ks[1], (a_ch, c_in), fan_out=a_ch),
        bn_gamma=jnp.ones((a_ch,), jnp.float32),
        bn_beta=jnp.zeros((a_ch,), jnp.float32),
        bn_mean=jnp.zeros((a_ch,), jnp.float32),
        bn_var=jnp.ones((a_ch,), jnp.float32),
        channel_w=_kaiming(ks[2], (c_in, a_ch), fan_out=c_in),
        channel_b=jnp.zeros((c_in,), jnp.float32),
        filter_w=_kaiming(ks[3], (c_out, a_ch), fan_out=c_out),
        filter_b=jnp.zeros((c_out,), jnp.float32),
        spatial_w=_kaiming(ks[4], (k * k, a_ch), fan_out=k * k),
        spatial_b=jnp.zeros((k * k,), jnp.float32),
    )


if __name__ == "__main__":
    # Bottleneck_ODConv(c1=32, c2=32, shortcut=True, g=1, k=(3,3), e=0.5) -> c_ = 16
    b, c1, c2, h, w = 2, 32, 32, 16, 16
    c_hidden = int(c2 * 0.5)

    key = jax.random.PRNGKey(0)
    kx, k1, k2 = jax.random.split(key, 3)
    x = jax.random.normal(kx, (b, c1, h, w), dtype=jnp.float32)
    p_cv1 = init_odconv_params(k1, c1, c_hidden, k=3)
    p_cv2 = init_odconv_params(k2, c_hidden, c2, k=3)

    fwd = jax.jit(functools.partial(bottleneck_odconv_forward, shortcut=True))
    out = fwd(x, p_cv1, p_cv2)
    out = jax.block_until_ready(out)

    ref = bottleneck_odconv_ref(x, p_cv1, p_cv2, shortcut=True)
    assert out.shape == (b, c2, h, w), f"bad output shape {out.shape}"
    assert jnp.allclose(out, ref, atol=2e-2, rtol=2e-2), (
        "mismatch vs reference: max abs err = "
        f"{float(jnp.max(jnp.abs(out - ref)))}"
    )

    print("KERNEL_OK")
</pallas_src>

<mosaic_0001>
module attributes {stable_mosaic.version = 11 : i64} {
  func.func @_odconv_mm_kernel(%arg0: i32, %arg1: memref<1x16x288xf32, #tpu.memory_space<vmem>>, %arg2: memref<1x288x256xf32, #tpu.memory_space<vmem>>, %arg3: memref<1x16x256xf32, #tpu.memory_space<vmem>>) attributes {dimension_semantics = [#tpu.dimension_semantics<parallel>], iteration_bounds = array<i64: 2>, scalar_prefetch = 0 : i64, scratch_operands = 0 : i64, tpu.core_type = #tpu.core_type<tc>, window_params = [{transform_indices = @transform_0, window_bounds = array<i64: 1, 16, 288>}, {transform_indices = @transform_1, window_bounds = array<i64: 1, 288, 256>}, {transform_indices = @transform_2, window_bounds = array<i64: 1, 16, 256>}]} {
    %c0 = arith.constant 0 : index
    %c0_0 = arith.constant 0 : index
    %c0_1 = arith.constant 0 : index
    %0 = vector.load %arg1[%c0, %c0_0, %c0_1] : memref<1x16x288xf32, #tpu.memory_space<vmem>>, vector<1x16x288xf32>
    %1 = vector.shape_cast %0 : vector<1x16x288xf32> to vector<16x288xf32>
    %c0_2 = arith.constant 0 : index
    %c0_3 = arith.constant 0 : index
    %c0_4 = arith.constant 0 : index
    %2 = vector.load %arg2[%c0_2, %c0_3, %c0_4] : memref<1x288x256xf32, #tpu.memory_space<vmem>>, vector<1x288x256xf32>
    %3 = vector.shape_cast %2 : vector<1x288x256xf32> to vector<288x256xf32>
    %cst = arith.constant dense<0.000000e+00> : vector<16x256xf32>
    %4 = tpu.matmul %1, %3, %cst {dimension_numbers = #tpu.dot_dimension_numbers<[1], [0], [0], [1], [0, 0, 1, 1], [], []>} : vector<16x288xf32>, vector<288x256xf32>, vector<16x256xf32> -> vector<16x256xf32>
    %c0_5 = arith.constant 0 : index
    %c0_6 = arith.constant 0 : index
    %c0_7 = arith.constant 0 : index
    %5 = vector.load %arg3[%c0_5, %c0_6, %c0_7] : memref<1x16x256xf32, #tpu.memory_space<vmem>>, vector<1x16x256xf32>
    %6 = vector.shape_cast %5 : vector<1x16x256xf32> to vector<16x256xf32>
    %7 = vector.shape_cast %4 : vector<16x256xf32> to vector<1x16x256xf32>
    tpu.vector_store %arg3[%c0_5, %c0_6, %c0_7], %7 {strides = array<i32>} : memref<1x16x256xf32, #tpu.memory_space<vmem>>, vector<1x16x256xf32>,
    return
  }
  func.func @transform_0(%arg0: i32) -> (i32, i32, i32) {
    %c0_i32 = arith.constant 0 : i32
    %c0_i32_0 = arith.constant 0 : i32
    %c0_i32_1 = arith.constant 0 : i32
    return %arg0, %c0_i32, %c0_i32_0 : i32, i32, i32
  }
  func.func @transform_1(%arg0: i32) -> (i32, i32, i32) {
    %c0_i32 = arith.constant 0 : i32
    %c0_i32_0 = arith.constant 0 : i32
    %c0_i32_1 = arith.constant 0 : i32
    return %arg0, %c0_i32, %c0_i32_0 : i32, i32, i32
  }
  func.func @transform_2(%arg0: i32) -> (i32, i32, i32) {
    %c0_i32 = arith.constant 0 : i32
    %c0_i32_0 = arith.constant 0 : i32
    %c0_i32_1 = arith.constant 0 : i32
    return %arg0, %c0_i32, %c0_i32_0 : i32, i32, i32
  }
}

module attributes {stable_mosaic.version = 11 : i64} {
  func.func @_odconv_mm_res_kernel(%arg0: i32, %arg1: memref<1x32x144xf32, #tpu.memory_space<vmem>>, %arg2: memref<1x144x256xf32, #tpu.memory_space<vmem>>, %arg3: memref<1x32x256xf32, #tpu.memory_space<vmem>>, %arg4: memref<1x32x256xf32, #tpu.memory_space<vmem>>) attributes {dimension_semantics = [#tpu.dimension_semantics<parallel>], iteration_bounds = array<i64: 2>, scalar_prefetch = 0 : i64, scratch_operands = 0 : i64, tpu.core_type = #tpu.core_type<tc>, window_params = [{transform_indices = @transform_0, window_bounds = array<i64: 1, 32, 144>}, {transform_indices = @transform_1, window_bounds = array<i64: 1, 144, 256>}, {transform_indices = @transform_2, window_bounds = array<i64: 1, 32, 256>}, {transform_indices = @transform_3, window_bounds = array<i64: 1, 32, 256>}]} {
    %c0 = arith.constant 0 : index
    %c0_0 = arith.constant 0 : index
    %c0_1 = arith.constant 0 : index
    %0 = vector.load %arg1[%c0, %c0_0, %c0_1] : memref<1x32x144xf32, #tpu.memory_space<vmem>>, vector<1x32x144xf32>
    %1 = vector.shape_cast %0 : vector<1x32x144xf32> to vector<32x144xf32>
    %c0_2 = arith.constant 0 : index
    %c0_3 = arith.constant 0 : index
    %c0_4 = arith.constant 0 : index
    %2 = vector.load %arg2[%c0_2, %c0_3, %c0_4] : memref<1x144x256xf32, #tpu.memory_space<vmem>>, vector<1x144x256xf32>
    %3 = vector.shape_cast %2 : vector<1x144x256xf32> to vector<144x256xf32>
    %cst = arith.constant dense<0.000000e+00> : vector<32x256xf32>
    %4 = tpu.matmul %1, %3, %cst {dimension_numbers = #tpu.dot_dimension_numbers<[1], [0], [0], [1], [0, 0, 1, 1], [], []>} : vector<32x144xf32>, vector<144x256xf32>, vector<32x256xf32> -> vector<32x256xf32>
    %c0_5 = arith.constant 0 : index
    %c0_6 = arith.constant 0 : index
    %c0_7 = arith.constant 0 : index
    %5 = vector.load %arg3[%c0_5, %c0_6, %c0_7] : memref<1x32x256xf32, #tpu.memory_space<vmem>>, vector<1x32x256xf32>
    %6 = vector.shape_cast %5 : vector<1x32x256xf32> to vector<32x256xf32>
    %7 = arith.addf %4, %6 : vector<32x256xf32>
    %c0_8 = arith.constant 0 : index
    %c0_9 = arith.constant 0 : index
    %c0_10 = arith.constant 0 : index
    %8 = vector.load %arg4[%c0_8, %c0_9, %c0_10] : memref<1x32x256xf32, #tpu.memory_space<vmem>>, vector<1x32x256xf32>
    %9 = vector.shape_cast %8 : vector<1x32x256xf32> to vector<32x256xf32>
    %10 = vector.shape_cast %7 : vector<32x256xf32> to vector<1x32x256xf32>
    tpu.vector_store %arg4[%c0_8, %c0_9, %c0_10], %10 {strides = array<i32>} : memref<1x32x256xf32, #tpu.memory_space<vmem>>, vector<1x32x256xf32>,
    return
  }
  func.func @transform_0(%arg0: i32) -> (i32, i32, i32) {
    %c0_i32 = arith.constant 0 : i32
    %c0_i32_0 = arith.constant 0 : i32
    %c0_i32_1 = arith.constant 0 : i32
    return %arg0, %c0_i32, %c0_i32_0 : i32, i32, i32
  }
  func.func @transform_1(%arg0: i32) -> (i32, i32, i32) {
    %c0_i32 = arith.constant 0 : i32
    %c0_i32_0 = arith.constant 0 : i32
    %c0_i32_1 = arith.constant 0 : i32
    return %arg0, %c0_i32, %c0_i32_0 : i32, i32, i32
  }
  func.func @transform_2(%arg0: i32) -> (i32, i32, i32) {
    %c0_i32 = arith.constant 0 : i32
    %c0_i32_0 = arith.constant 0 : i32
    %c0_i32_1 = arith.constant 0 : i32
    return %arg0, %c0_i32, %c0_i32_0 : i32, i32, i32
  }
  func.func @transform_3(%arg0: i32) -> (i32, i32, i32) {
    %c0_i32 = arith.constant 0 : i32
    %c0_i32_0 = arith.constant 0 : i32
    %c0_i32_1 = arith.constant 0 : i32
    return %arg0, %c0_i32, %c0_i32_0 : i32, i32, i32
  }
}

</mosaic_0001>

<llo_original>
// kernel: bottleneck_odconv_forward.2
$region0: #{bottleneck_odconv_forward.2}
  #allocation0 [shape = 'u32[]', space=smem, size = 0x4, offset = 0x4, fixed_abs, tag = 'smem constant byte address 0x4 - core index']
  #allocation1 [shape = 'u32[72,128]{1,0:T(1,128)}', space=vmem, size = 0x9000, scoped, tag = 'internal scratch']
  %s0 = inlined_call_operand.vmem [shape: f32[2,16,288], index: 0, kind: input, shape index: {}]
  %s1 = inlined_call_operand.vmem [shape: f32[2,288,256], index: 1, kind: input, shape index: {}]
  %s2 = inlined_call_operand.vmem [shape: f32[2,16,256], index: 2, kind: output, shape index: {}]
  %s3 = sld [smem:[#allocation0]]
  $region41: #{bottleneck_odconv_forward.2} parent=0
    _
  %s5 = ssub.s32 1, %s3
  %s6 = scalar_select 0, %s5, %s3
  loop: start=0, step=1, limit=4
  $region2: #{bottleneck_odconv_forward.2} parent=0 // loop_pre_header
    _
  $region3: #{bottleneck_odconv_forward.2} parent=0 // loop_header
    %s8 = sphi 0, %s12
    %p9 = scmp.ge.s32.totalorder %s8, 4
    %s18 = sphi 0, %s20
    %s21 = sphi 0, %s18
    %s22 = sphi 0, %s21
    %s38 = sphi 0, %s22
    %s44 = sphi 0, %s46
    %s47 = sphi 0, %s44
    %s48 = sphi 0, %s47
    %s64 = sphi 0, %s48
    %s70 = sphi 0, %s72
    %s73 = sphi 0, %s70
    %s74 = sphi 0, %s73
    %s90 = sphi 0, %s74
  $region4: #{bottleneck_odconv_forward.2} parent=0 // loop_header_branch
    %11 = sbr.rel (%p9) target = $region8
  $region5: #{bottleneck_odconv_forward.2} parent=0 // loop_body
    %s13 = ssub.s32 %s8, 1
    %s14 = ssub.s32 %s8, 2
    %s15 = sadd.s32 %s8, 1
    %s16 = ssub.s32 %s8, %s15
    %p17 = scmp.eq.s32.totalorder %s16, 0
    %s19 = sadd.s32 %s18, 1
    %s20 = scalar_select %p17, %s18, %s19
    %p23 = pneg %p17
    %p24 = scmp.eq.s32.totalorder %s8, 1
    %p25 = por %p23, %p24
    %p26 = scmp.ne.s32.totalorder %s18, %s21
    %p27 = scmp.eq.s32.totalorder %s8, 0
    %p28 = por %p26, %p27
    %p29 = scmp.ne.s32.totalorder %s18, %s21
    %p30 = scmp.eq.s32.totalorder %s13, 1
    %p31 = por %p29, %p30
    %p32 = scmp.ne.s32.totalorder %s21, %s22
    %p33 = scmp.eq.s32.totalorder %s13, 0
    %p34 = por %p32, %p33
    %p35 = scmp.ne.s32.totalorder %s21, %s22
    %p36 = scmp.eq.s32.totalorder %s14, 1
    %p37 = por %p35, %p36
    %p39 = scmp.ne.s32.totalorder %s22, %s38
    %p40 = scmp.eq.s32.totalorder %s14, 0
    %p41 = por %p39, %p40
    %s42 = ssub.s32 %s8, %s15
    %p43 = scmp.eq.s32.totalorder %s42, 0
    %s45 = sadd.s32 %s44, 1
    %s46 = scalar_select %p43, %s44, %s45
    %p49 = pneg %p43
    %p50 = scmp.eq.s32.totalorder %s8, 1
    %p51 = por %p49, %p50
    %p52 = scmp.ne.s32.totalorder %s44, %s47
    %p53 = scmp.eq.s32.totalorder %s8, 0
    %p54 = por %p52, %p53
    %p55 = scmp.ne.s32.totalorder %s44, %s47
    %p56 = scmp.eq.s32.totalorder %s13, 1
    %p57 = por %p55, %p56
    %p58 = scmp.ne.s32.totalorder %s47, %s48
    %p59 = scmp.eq.s32.totalorder %s13, 0
    %p60 = por %p58, %p59
    %p61 = scmp.ne.s32.totalorder %s47, %s48
    %p62 = scmp.eq.s32.totalorder %s14, 1
    %p63 = por %p61, %p62
    %p65 = scmp.ne.s32.totalorder %s48, %s64
    %p66 = scmp.eq.s32.totalorder %s14, 0
    %p67 = por %p65, %p66
    %s68 = ssub.s32 %s8, %s15
    %p69 = scmp.eq.s32.totalorder %s68, 0
    %s71 = sadd.s32 %s70, 1
    %s72 = scalar_select %p69, %s70, %s71
    %p75 = pneg %p69
    %p76 = scmp.eq.s32.totalorder %s8, 1
    %p77 = por %p75, %p76
    %p78 = scmp.ne.s32.totalorder %s70, %s73
    %p79 = scmp.eq.s32.totalorder %s8, 0
    %p80 = por %p78, %p79
    %p81 = scmp.ne.s32.totalorder %s70, %s73
    %p82 = scmp.eq.s32.totalorder %s13, 1
    %p83 = por %p81, %p82
    %p84 = scmp.ne.s32.totalorder %s73, %s74
    %p85 = scmp.eq.s32.totalorder %s13, 0
    %p86 = por %p84, %p85
    %p87 = scmp.ne.s32.totalorder %s73, %s74
    %p88 = scmp.eq.s32.totalorder %s14, 1
    %p89 = por %p87, %p88
    %p91 = scmp.ne.s32.totalorder %s74, %s90
    %p92 = scmp.eq.s32.totalorder %s14, 0
    %p93 = por %p91, %p92
    %p94 = scmp.le.s32.totalorder 1, %s8
    %p95 = scmp.lt.s32.totalorder %s8, 3
    %p96 = pnand %p94, %p95
    %p97 = pneg %p96
    // Predicated region
    $region9: #{bottleneck_odconv_forward.2} parent=5 // pred_check
      _
    $region10: #{bottleneck_odconv_forward.2} parent=5 // pred_check_branch
      %99 = sbr.rel (%p96) target = $region12
    $region11: #{bottleneck_odconv_forward.2} parent=5 // pred_region
      %s100 = ssub.s32 %s8, 1
    $region12: #{bottleneck_odconv_forward.2} parent=5 // pred_fallthru
      _
    %p101 = scmp.lt.s32.totalorder %s8, 2
    // Predicated region
    $region13: #{bottleneck_odconv_forward.2} parent=5 // pred_check
      %p102 = pneg %p101
    $region14: #{bottleneck_odconv_forward.2} parent=5 // pred_check_branch
      %104 = sbr.rel (%p102) target = $region16
    $region15: #{bottleneck_odconv_forward.2} parent=5 // pred_region
      // Predicated region
      $region17: #{bottleneck_odconv_forward.2} parent=15 // pred_check
        %p105 = pneg %p28
      $region18: #{bottleneck_odconv_forward.2} parent=15 // pred_check_branch
        %107 = sbr.rel (%p105) target = $region20
      $region19: #{bottleneck_odconv_forward.2} parent=15 // pred_region
        %p108 = scmp.lt.s32.totalorder %s8, 1
        %s109 = scalar_select %p108, %s8, 1
        %s110 = smul.addr %s109, 6
        %s111 = smul.addr %s110, 8
        %s112 = scalar_lea.vmem %s0, %s111
      $region20: #{bottleneck_odconv_forward.2} parent=15 // pred_fallthru
        _
      // Predicated region
      $region21: #{bottleneck_odconv_forward.2} parent=15 // pred_check
        %p113 = pneg %p54
      $region22: #{bottleneck_odconv_forward.2} parent=15 // pred_check_branch
        %115 = sbr.rel (%p113) target = $region24
      $region23: #{bottleneck_odconv_forward.2} parent=15 // pred_region
        %p116 = scmp.lt.s32.totalorder %s8, 1
        %s117 = scalar_select %p116, %s8, 1
        %s118 = smul.addr %s117, 72
        %s119 = smul.addr %s118, 8
        %s120 = scalar_lea.vmem %s1, %s119
      $region24: #{bottleneck_odconv_forward.2} parent=15 // pred_fallthru
        _
    $region16: #{bottleneck_odconv_forward.2} parent=5 // pred_fallthru
      _
    %p121 = scmp.le.s32.totalorder 1, %s8
    %p122 = scmp.lt.s32.totalorder %s8, 3
    %p123 = pnand %p121, %p122
    %p124 = pneg %p123
    // Predicated region
    $region25: #{bottleneck_odconv_forward.2} parent=5 // pred_check
      _
    $region26: #{bottleneck_odconv_forward.2} parent=5 // pred_check_branch
      %126 = sbr.rel (%p123) target = $region28
    $region27: #{bottleneck_odconv_forward.2} parent=5 // pred_region
      %s127 = ssub.s32 %s8, 1
      %p128 = scmp.lt.s32.totalorder %s13, 1
      %s129 = scalar_select %p128, %s13, 1
      %s130 = smul.addr %s129, 6
      %s131 = smul.addr %s130, 8
      %s132 = scalar_lea.vmem %s0, %s131
      %p133 = pneg %p34
      %p134 = pneg %p31
      %p135 = scmp.lt.s32.totalorder %s13, 1
      %s136 = scalar_select %p135, %s13, 1
      %s137 = smul.addr %s136, 72
      %s138 = smul.addr %s137, 8
      %s139 = scalar_lea.vmem %s1, %s138
      %p140 = pneg %p60
      %p141 = pneg %p57
      %p142 = pneg %p86
      %p143 = pneg %p83
      %p144 = scmp.lt.s32.totalorder %s13, 1
      %s145 = scalar_select %p144, %s13, 1
      %s146 = smul.addr %s145, 4
      %s147 = smul.addr %s146, 8
      %s148 = scalar_lea.vmem %s2, %s147
      %p149 = scmp.lt.s32.totalorder %s13, 1
      %s150 = scalar_select %p149, %s13, 1
      %s151 = smul.addr %s150, 6
      %s152 = smul.addr %s151, 8
      %s153 = scalar_lea.vmem %s0, %s152
      %p154 = scmp.lt.s32.totalorder %s13, 1
      %s155 = scalar_select %p154, %s13, 1
      %s156 = smul.addr %s155, 72
      %s157 = smul.addr %s156, 8
      %s158 = scalar_lea.vmem %s1, %s157
      %p159 = scmp.lt.s32.totalorder %s13, 1
      %s160 = scalar_select %p159, %s13, 1
      %s161 = smul.addr %s160, 4
      %s162 = smul.addr %s161, 8
      %s163 = scalar_lea.vmem %s2, %s162
      %v164 = vld [vmem:[%s153] sm:$0xff]
      %v165 = vld [vmem:[%s153 + $0x8] sm:$0xff]
      %v166 = vld [vmem:[%s153 + $0x10] sm:$0xff]
      %v167 = vld [vmem:[%s153 + $0x18] sm:$0xff]
      %v168 = vld [vmem:[%s153 + $0x20] sm:$0xff]
      %v169 = vld [vmem:[%s153 + $0x28] sm:$0xff]
      %v170 = vld [vmem:[%s158] sm:$0xff]
      %v171 = vld [vmem:[%s158 + $0x8] sm:$0xff]
      %v172 = vld [vmem:[%s158 + $0x10] sm:$0xff]
      %v173 = vld [vmem:[%s158 + $0x18] sm:$0xff]
      %v174 = vld [vmem:[%s158 + $0x20] sm:$0xff]
      %v175 = vld [vmem:[%s158 + $0x28] sm:$0xff]
      %v176 = vld [vmem:[%s158 + $0x30] sm:$0xff]
      %v177 = vld [vmem:[%s158 + $0x38] sm:$0xff]
      %v178 = vld [vmem:[%s158 + $0x40] sm:$0xff]
      %v179 = vld [vmem:[%s158 + $0x48] sm:$0xff]
      %v180 = vld [vmem:[%s158 + $0x50] sm:$0xff]
      %v181 = vld [vmem:[%s158 + $0x58] sm:$0xff]
      %v182 = vld [vmem:[%s158 + $0x60] sm:$0xff]
      %v183 = vld [vmem:[%s158 + $0x68] sm:$0xff]
      %v184 = vld [vmem:[%s158 + $0x70] sm:$0xff]
      %v185 = vld [vmem:[%s158 + $0x78] sm:$0xff]
      %v186 = vld [vmem:[%s158 + $0x80] sm:$0xff]
      %v187 = vld [vmem:[%s158 + $0x88] sm:$0xff]
      %v188 = vld [vmem:[%s158 + $0x90] sm:$0xff]
      %v189 = vld [vmem:[%s158 + $0x98] sm:$0xff]
      %v190 = vld [vmem:[%s158 + $0xa0] sm:$0xff]
      %v191 = vld [vmem:[%s158 + $0xa8] sm:$0xff]
      %v192 = vld [vmem:[%s158 + $0xb0] sm:$0xff]
      %v193 = vld [vmem:[%s158 + $0xb8] sm:$0xff]
      %v194 = vld [vmem:[%s158 + $0xc0] sm:$0xff]
      %v195 = vld [vmem:[%s158 + $0xc8] sm:$0xff]
      %v196 = vld [vmem:[%s158 + $0xd0] sm:$0xff]
      %v197 = vld [vmem:[%s158 + $0xd8] sm:$0xff]
      %v198 = vld [vmem:[%s158 + $0xe0] sm:$0xff]
      %v199 = vld [vmem:[%s158 + $0xe8] sm:$0xff]
      %v200 = vld [vmem:[%s158 + $0xf0] sm:$0xff]
      %v201 = vld [vmem:[%s158 + $0xf8] sm:$0xff]
      %v202 = vld [vmem:[%s158 + $0x100] sm:$0xff]
      %v203 = vld [vmem:[%s158 + $0x108] sm:$0xff]
      %v204 = vld [vmem:[%s158 + $0x110] sm:$0xff]
      %v205 = vld [vmem:[%s158 + $0x118] sm:$0xff]
      %v206 = vld [vmem:[%s158 + $0x120] sm:$0xff]
      %v207 = vld [vmem:[%s158 + $0x128] sm:$0xff]
      %v208 = vld [vmem:[%s158 + $0x130] sm:$0xff]
      %v209 = vld [vmem:[%s158 + $0x138] sm:$0xff]
      %v210 = vld [vmem:[%s158 + $0x140] sm:$0xff]
      %v211 = vld [vmem:[%s158 + $0x148] sm:$0xff]
      %v212 = vld [vmem:[%s158 + $0x150] sm:$0xff]
      %v213 = vld [vmem:[%s158 + $0x158] sm:$0xff]
      %v214 = vld [vmem:[%s158 + $0x160] sm:$0xff]
      %v215 = vld [vmem:[%s158 + $0x168] sm:$0xff]
      %v216 = vld [vmem:[%s158 + $0x170] sm:$0xff]
      %v217 = vld [vmem:[%s158 + $0x178] sm:$0xff]
      %v218 = vld [vmem:[%s158 + $0x180] sm:$0xff]
      %v219 = vld [vmem:[%s158 + $0x188] sm:$0xff]
      %v220 = vld [vmem:[%s158 + $0x190] sm:$0xff]
      %v221 = vld [vmem:[%s158 + $0x198] sm:$0xff]
      %v222 = vld [vmem:[%s158 + $0x1a0] sm:$0xff]
      %v223 = vld [vmem:[%s158 + $0x1a8] sm:$0xff]
      %v224 = vld [vmem:[%s158 + $0x1b0] sm:$0xff]
      %v225 = vld [vmem:[%s158 + $0x1b8] sm:$0xff]
      %v226 = vld [vmem:[%s158 + $0x1c0] sm:$0xff]
      %v227 = vld [vmem:[%s158 + $0x1c8] sm:$0xff]
      %v228 = vld [vmem:[%s158 + $0x1d0] sm:$0xff]
      %v229 = vld [vmem:[%s158 + $0x1d8] sm:$0xff]
      %v230 = vld [vmem:[%s158 + $0x1e0] sm:$0xff]
      %v231 = vld [vmem:[%s158 + $0x1e8] sm:$0xff]
      %v232 = vld [vmem:[%s158 + $0x1f0] sm:$0xff]
      %v233 = vld [vmem:[%s158 + $0x1f8] sm:$0xff]
      %v234 = vld [vmem:[%s158 + $0x200] sm:$0xff]
      %v235 = vld [vmem:[%s158 + $0x208] sm:$0xff]
      %v236 = vld [vmem:[%s158 + $0x210] sm:$0xff]
      %v237 = vld [vmem:[%s158 + $0x218] sm:$0xff]
      %v238 = vld [vmem:[%s158 + $0x220] sm:$0xff]
      %v239 = vld [vmem:[%s158 + $0x228] sm:$0xff]
      %v240 = vld [vmem:[%s158 + $0x230] sm:$0xff]
      %v241 = vld [vmem:[%s158 + $0x238] sm:$0xff]
      %vm242 = vcmask 261120
      %v244 = vsel %vm242, %v166, 0
      %v247 = vsel %vm242, %v169, 0
      %249 = vmatpush.msra.mxu0 %v200
      %250 = vmatpush.msra.mxu0 %v198
      %251 = vmatpush.msra.mxu0 %v196
      %252 = vmatpush.msra.mxu0 %v194
      %253 = vmatpush.msra.mxu0 %v192
      %254 = vmatpush.msra.mxu0 %v190
      %255 = vmatpush.msra.mxu0 %v188
      %256 = vmatpush.msra.mxu0 %v186
      %257 = vmatpush.msra.mxu0 %v184
      %258 = vmatpush.msra.mxu0 %v182
      %259 = vmatpush.msra.mxu0 %v180
      %260 = vmatpush.msra.mxu0 %v178
      %261 = vmatpush.msra.mxu0 %v176
      %262 = vmatpush.msra.mxu0 %v174
      %263 = vmatpush.msra.mxu0 %v172
      %264 = vmatpush.msra.mxu0 %v170
      %265 = vmatmul.f32.gmra.mxu0 %v164
      %v266 = vpop.f32.mrf.mxu0
      %v267 = vadd.f32 0.0, %v266
      %268 = vmatmul.f32.gmra.mxu0 %v167
      %v269 = vpop.f32.mrf.mxu0
      %v270 = vadd.f32 0.0, %v269
      %271 = vdwg.mxu0
      %272 = vmatpush.msra.mxu0 %v232
      %273 = vmatpush.msra.mxu0 %v230
      %274 = vmatpush.msra.mxu0 %v228
      %275 = vmatpush.msra.mxu0 %v226
      %276 = vmatpush.msra.mxu0 %v224
      %277 = vmatpush.msra.mxu0 %v222
      %278 = vmatpush.msra.mxu0 %v220
      %279 = vmatpush.msra.mxu0 %v218
      %280 = vmatpush.msra.mxu0 %v216
      %281 = vmatpush.msra.mxu0 %v214
      %282 = vmatpush.msra.mxu0 %v212
      %283 = vmatpush.msra.mxu0 %v210
      %284 = vmatpush.msra.mxu0 %v208
      %285 = vmatpush.msra.mxu0 %v206
      %286 = vmatpush.msra.mxu0 %v204
      %287 = vmatpush.msra.mxu0 %v202
      %288 = vmatmul.f32.gmra.mxu0 %v165
      %v289 = vpop.f32.mrf.mxu0
      %v290 = vadd.f32 %v267, %v289
      %291 = vmatmul.f32.gmra.mxu0 %v168
      %v292 = vpop.f32.mrf.mxu0
      %v293 = vadd.f32 %v270, %v292
      %294 = vdwg.mxu0
      %295 = vmatpush.msra.mxu0 0.0
      %296 = vmatpush.msra.mxu0 0.0
      %297 = vmatpush.msra.mxu0 0.0
      %298 = vmatpush.msra.mxu0 0.0
      %299 = vmatpush.msra.mxu0 0.0
      %300 = vmatpush.msra.mxu0 0.0
      %301 = vmatpush.msra.mxu0 0.0
      %302 = vmatpush.msra.mxu0 0.0
      %303 = vmatpush.msra.mxu0 0.0
      %304 = vmatpush.msra.mxu0 0.0
      %305 = vmatpush.msra.mxu0 0.0
      %306 = vmatpush.msra.mxu0 0.0
      %307 = vmatpush.msra.mxu0 %v240
      %308 = vmatpush.msra.mxu0 %v238
      %309 = vmatpush.msra.mxu0 %v236
      %310 = vmatpush.msra.mxu0 %v234
      %311 = vmatmul.f32.gmra.mxu0 %v244
      %v312 = vpop.f32.mrf.mxu0
      %v313 = vadd.f32 %v290, %v312
      %314 = vmatmul.f32.gmra.mxu0 %v247
      %v315 = vpop.f32.mrf.mxu0
      %v316 = vadd.f32 %v293, %v315
      %317 = vdwg.mxu0
      %318 = vmatpush.msra.mxu0 %v201
      %319 = vmatpush.msra.mxu0 %v199
      %320 = vmatpush.msra.mxu0 %v197
      %321 = vmatpush.msra.mxu0 %v195
      %322 = vmatpush.msra.mxu0 %v193
      %323 = vmatpush.msra.mxu0 %v191
      %324 = vmatpush.msra.mxu0 %v189
      %325 = vmatpush.msra.mxu0 %v187
      %326 = vmatpush.msra.mxu0 %v185
      %327 = vmatpush.msra.mxu0 %v183
      %328 = vmatpush.msra.mxu0 %v181
      %329 = vmatpush.msra.mxu0 %v179
      %330 = vmatpush.msra.mxu0 %v177
      %331 = vmatpush.msra.mxu0 %v175
      %332 = vmatpush.msra.mxu0 %v173
      %333 = vmatpush.msra.mxu0 %v171
      %334 = vmatmul.f32.gmra.mxu0 %v164
      %v335 = vpop.f32.mrf.mxu0
      %v336 = vadd.f32 0.0, %v335
      %337 = vmatmul.f32.gmra.mxu0 %v167
      %v338 = vpop.f32.mrf.mxu0
      %v339 = vadd.f32 0.0, %v338
      %340 = vdwg.mxu0
      %341 = vmatpush.msra.mxu0 %v233
      %342 = vmatpush.msra.mxu0 %v231
      %343 = vmatpush.msra.mxu0 %v229
      %344 = vmatpush.msra.mxu0 %v227
      %345 = vmatpush.msra.mxu0 %v225
      %346 = vmatpush.msra.mxu0 %v223
      %347 = vmatpush.msra.mxu0 %v221
      %348 = vmatpush.msra.mxu0 %v219
      %349 = vmatpush.msra.mxu0 %v217
      %350 = vmatpush.msra.mxu0 %v215
      %351 = vmatpush.msra.mxu0 %v213
      %352 = vmatpush.msra.mxu0 %v211
      %353 = vmatpush.msra.mxu0 %v209
      %354 = vmatpush.msra.mxu0 %v207
      %355 = vmatpush.msra.mxu0 %v205
      %356 = vmatpush.msra.mxu0 %v203
      %357 = vmatmul.f32.gmra.mxu0 %v165
      %v358 = vpop.f32.mrf.mxu0
      %v359 = vadd.f32 %v336, %v358
      %360 = vmatmul.f32.gmra.mxu0 %v168
      %v361 = vpop.f32.mrf.mxu0
      %v362 = vadd.f32 %v339, %v361
      %363 = vdwg.mxu0
      %364 = vmatpush.msra.mxu0 0.0
      %365 = vmatpush.msra.mxu0 0.0
      %366 = vmatpush.msra.mxu0 0.0
      %367 = vmatpush.msra.mxu0 0.0
      %368 = vmatpush.msra.mxu0 0.0
      %369 = vmatpush.msra.mxu0 0.0
      %370 = vmatpush.msra.mxu0 0.0
      %371 = vmatpush.msra.mxu0 0.0
      %372 = vmatpush.msra.mxu0 0.0
      %373 = vmatpush.msra.mxu0 0.0
      %374 = vmatpush.msra.mxu0 0.0
      %375 = vmatpush.msra.mxu0 0.0
      %376 = vmatpush.msra.mxu0 %v241
      %377 = vmatpush.msra.mxu0 %v239
      %378 = vmatpush.msra.mxu0 %v237
      %379 = vmatpush.msra.mxu0 %v235
      %380 = vmatmul.f32.gmra.mxu0 %v244
      %v381 = vpop.f32.mrf.mxu0
      %v382 = vadd.f32 %v359, %v381
      %383 = vmatmul.f32.gmra.mxu0 %v247
      %v384 = vpop.f32.mrf.mxu0
      %v385 = vadd.f32 %v362, %v384
      %386 = vdwg.mxu0
      %387 = vst [vmem:[%s163] sm:$0xff] %v313
      %388 = vst [vmem:[%s163 + $0x8] sm:$0xff] %v382
      %389 = vst [vmem:[%s163 + $0x10] sm:$0xff] %v316
      %390 = vst [vmem:[%s163 + $0x18] sm:$0xff] %v385
      %p391 = scmp.lt.s32.totalorder %s13, 1
      %s392 = scalar_select %p391, %s13, 1
      %s393 = smul.addr %s392, 4
      %s394 = smul.addr %s393, 8
      %s395 = scalar_lea.vmem %s2, %s394
      // Predicated region
      $region29: #{bottleneck_odconv_forward.2} parent=27 // pred_check
        %p396 = pneg %p83
      $region30: #{bottleneck_odconv_forward.2} parent=27 // pred_check_branch
        %398 = sbr.rel (%p396) target = $region32
      $region31: #{bottleneck_odconv_forward.2} parent=27 // pred_region
        _
      $region32: #{bottleneck_odconv_forward.2} parent=27 // pred_fallthru
        _
    $region28: #{bottleneck_odconv_forward.2} parent=5 // pred_fallthru
      _
    %p399 = scmp.le.s32.totalorder 2, %s8
    // Predicated region
    $region33: #{bottleneck_odconv_forward.2} parent=5 // pred_check
      %p400 = pneg %p399
    $region34: #{bottleneck_odconv_forward.2} parent=5 // pred_check_branch
      %402 = sbr.rel (%p400) target = $region36
    $region35: #{bottleneck_odconv_forward.2} parent=5 // pred_region
      %s403 = ssub.s32 %s8, 2
      // Predicated region
      $region37: #{bottleneck_odconv_forward.2} parent=35 // pred_check
        %p404 = pneg %p89
      $region38: #{bottleneck_odconv_forward.2} parent=35 // pred_check_branch
        %406 = sbr.rel (%p404) target = $region40
      $region39: #{bottleneck_odconv_forward.2} parent=35 // pred_region
        %p407 = scmp.lt.s32.totalorder %s14, 1
        %s408 = scalar_select %p407, %s14, 1
        %s409 = smul.addr %s408, 4
        %s410 = smul.addr %s409, 8
        %s411 = scalar_lea.vmem %s2, %s410
      $region40: #{bottleneck_odconv_forward.2} parent=35 // pred_fallthru
        _
    $region36: #{bottleneck_odconv_forward.2} parent=5 // pred_fallthru
      _
  $region6: #{bottleneck_odconv_forward.2} parent=0 // loop_footer
    %s12 = sadd.s32 1, %s8
  $region7: #{bottleneck_odconv_forward.2} parent=0 // loop_footer_branch
    %7 = sbr.rel target = $region3
  $region8: #{bottleneck_odconv_forward.2} parent=0 // loop_exit
    _

// kernel: bottleneck_odconv_forward.3
$region0: #{bottleneck_odconv_forward.3}
  #allocation0 [shape = 'u32[]', space=smem, size = 0x4, offset = 0x4, fixed_abs, tag = 'smem constant byte address 0x4 - core index']
  #allocation1 [shape = 'u32[72,128]{1,0:T(1,128)}', space=vmem, size = 0x9000, scoped, tag = 'internal scratch']
  %s0 = inlined_call_operand.vmem [shape: f32[2,32,144], index: 0, kind: input, shape index: {}]
  %s1 = inlined_call_operand.vmem [shape: f32[2,144,256], index: 1, kind: input, shape index: {}]
  %s2 = inlined_call_operand.vmem [shape: f32[2,32,256], index: 2, kind: input, shape index: {}]
  %s3 = inlined_call_operand.vmem [shape: f32[2,32,256], index: 3, kind: output, shape index: {}]
  %s4 = sld [smem:[#allocation0]]
  $region45: #{bottleneck_odconv_forward.3} parent=0
    _
  %s6 = ssub.s32 1, %s4
  %s7 = scalar_select 0, %s6, %s4
  loop: start=0, step=1, limit=4
  $region2: #{bottleneck_odconv_forward.3} parent=0 // loop_pre_header
    _
  $region3: #{bottleneck_odconv_forward.3} parent=0 // loop_header
    %s9 = sphi 0, %s13
    %p10 = scmp.ge.s32.totalorder %s9, 4
    %s19 = sphi 0, %s21
    %s22 = sphi 0, %s19
    %s23 = sphi 0, %s22
    %s39 = sphi 0, %s23
    %s45 = sphi 0, %s47
    %s48 = sphi 0, %s45
    %s49 = sphi 0, %s48
    %s65 = sphi 0, %s49
    %s71 = sphi 0, %s73
    %s74 = sphi 0, %s71
    %s75 = sphi 0, %s74
    %s91 = sphi 0, %s75
    %s97 = sphi 0, %s99
    %s100 = sphi 0, %s97
    %s101 = sphi 0, %s100
    %s117 = sphi 0, %s101
  $region4: #{bottleneck_odconv_forward.3} parent=0 // loop_header_branch
    %12 = sbr.rel (%p10) target = $region8
  $region5: #{bottleneck_odconv_forward.3} parent=0 // loop_body
    %s14 = ssub.s32 %s9, 1
    %s15 = ssub.s32 %s9, 2
    %s16 = sadd.s32 %s9, 1
    %s17 = ssub.s32 %s9, %s16
    %p18 = scmp.eq.s32.totalorder %s17, 0
    %s20 = sadd.s32 %s19, 1
    %s21 = scalar_select %p18, %s19, %s20
    %p24 = pneg %p18
    %p25 = scmp.eq.s32.totalorder %s9, 1
    %p26 = por %p24, %p25
    %p27 = scmp.ne.s32.totalorder %s19, %s22
    %p28 = scmp.eq.s32.totalorder %s9, 0
    %p29 = por %p27, %p28
    %p30 = scmp.ne.s32.totalorder %s19, %s22
    %p31 = scmp.eq.s32.totalorder %s14, 1
    %p32 = por %p30, %p31
    %p33 = scmp.ne.s32.totalorder %s22, %s23
    %p34 = scmp.eq.s32.totalorder %s14, 0
    %p35 = por %p33, %p34
    %p36 = scmp.ne.s32.totalorder %s22, %s23
    %p37 = scmp.eq.s32.totalorder %s15, 1
    %p38 = por %p36, %p37
    %p40 = scmp.ne.s32.totalorder %s23, %s39
    %p41 = scmp.eq.s32.totalorder %s15, 0
    %p42 = por %p40, %p41
    %s43 = ssub.s32 %s9, %s16
    %p44 = scmp.eq.s32.totalorder %s43, 0
    %s46 = sadd.s32 %s45, 1
    %s47 = scalar_select %p44, %s45, %s46
    %p50 = pneg %p44
    %p51 = scmp.eq.s32.totalorder %s9, 1
    %p52 = por %p50, %p51
    %p53 = scmp.ne.s32.totalorder %s45, %s48
    %p54 = scmp.eq.s32.totalorder %s9, 0
    %p55 = por %p53, %p54
    %p56 = scmp.ne.s32.totalorder %s45, %s48
    %p57 = scmp.eq.s32.totalorder %s14, 1
    %p58 = por %p56, %p57
    %p59 = scmp.ne.s32.totalorder %s48, %s49
    %p60 = scmp.eq.s32.totalorder %s14, 0
    %p61 = por %p59, %p60
    %p62 = scmp.ne.s32.totalorder %s48, %s49
    %p63 = scmp.eq.s32.totalorder %s15, 1
    %p64 = por %p62, %p63
    %p66 = scmp.ne.s32.totalorder %s49, %s65
    %p67 = scmp.eq.s32.totalorder %s15, 0
    %p68 = por %p66, %p67
    %s69 = ssub.s32 %s9, %s16
    %p70 = scmp.eq.s32.totalorder %s69, 0
    %s72 = sadd.s32 %s71, 1
    %s73 = scalar_select %p70, %s71, %s72
    %p76 = pneg %p70
    %p77 = scmp.eq.s32.totalorder %s9, 1
    %p78 = por %p76, %p77
    %p79 = scmp.ne.s32.totalorder %s71, %s74
    %p80 = scmp.eq.s32.totalorder %s9, 0
    %p81 = por %p79, %p80
    %p82 = scmp.ne.s32.totalorder %s71, %s74
    %p83 = scmp.eq.s32.totalorder %s14, 1
    %p84 = por %p82, %p83
    %p85 = scmp.ne.s32.totalorder %s74, %s75
    %p86 = scmp.eq.s32.totalorder %s14, 0
    %p87 = por %p85, %p86
    %p88 = scmp.ne.s32.totalorder %s74, %s75
    %p89 = scmp.eq.s32.totalorder %s15, 1
    %p90 = por %p88, %p89
    %p92 = scmp.ne.s32.totalorder %s75, %s91
    %p93 = scmp.eq.s32.totalorder %s15, 0
    %p94 = por %p92, %p93
    %s95 = ssub.s32 %s9, %s16
    %p96 = scmp.eq.s32.totalorder %s95, 0
    %s98 = sadd.s32 %s97, 1
    %s99 = scalar_select %p96, %s97, %s98
    %p102 = pneg %p96
    %p103 = scmp.eq.s32.totalorder %s9, 1
    %p104 = por %p102, %p103
    %p105 = scmp.ne.s32.totalorder %s97, %s100
    %p106 = scmp.eq.s32.totalorder %s9, 0
    %p107 = por %p105, %p106
    %p108 = scmp.ne.s32.totalorder %s97, %s100
    %p109 = scmp.eq.s32.totalorder %s14, 1
    %p110 = por %p108, %p109
    %p111 = scmp.ne.s32.totalorder %s100, %s101
    %p112 = scmp.eq.s32.totalorder %s14, 0
    %p113 = por %p111, %p112
    %p114 = scmp.ne.s32.totalorder %s100, %s101
    %p115 = scmp.eq.s32.totalorder %s15, 1
    %p116 = por %p114, %p115
    %p118 = scmp.ne.s32.totalorder %s101, %s117
    %p119 = scmp.eq.s32.totalorder %s15, 0
    %p120 = por %p118, %p119
    %p121 = scmp.le.s32.totalorder 1, %s9
    %p122 = scmp.lt.s32.totalorder %s9, 3
    %p123 = pnand %p121, %p122
    %p124 = pneg %p123
    // Predicated region
    $region9: #{bottleneck_odconv_forward.3} parent=5 // pred_check
      _
    $region10: #{bottleneck_odconv_forward.3} parent=5 // pred_check_branch
      %126 = sbr.rel (%p123) target = $region12
    $region11: #{bottleneck_odconv_forward.3} parent=5 // pred_region
      %s127 = ssub.s32 %s9, 1
    $region12: #{bottleneck_odconv_forward.3} parent=5 // pred_fallthru
      _
    %p128 = scmp.lt.s32.totalorder %s9, 2
    // Predicated region
    $region13: #{bottleneck_odconv_forward.3} parent=5 // pred_check
      %p129 = pneg %p128
    $region14: #{bottleneck_odconv_forward.3} parent=5 // pred_check_branch
      %131 = sbr.rel (%p129) target = $region16
    $region15: #{bottleneck_odconv_forward.3} parent=5 // pred_region
      // Predicated region
      $region17: #{bottleneck_odconv_forward.3} parent=15 // pred_check
        %p132 = pneg %p29
      $region18: #{bottleneck_odconv_forward.3} parent=15 // pred_check_branch
        %134 = sbr.rel (%p132) target = $region20
      $region19: #{bottleneck_odconv_forward.3} parent=15 // pred_region
        %p135 = scmp.lt.s32.totalorder %s9, 1
        %s136 = scalar_select %p135, %s9, 1
        %s137 = smul.addr %s136, 8
        %s138 = smul.addr %s137, 8
        %s139 = scalar_lea.vmem %s0, %s138
      $region20: #{bottleneck_odconv_forward.3} parent=15 // pred_fallthru
        _
      // Predicated region
      $region21: #{bottleneck_odconv_forward.3} parent=15 // pred_check
        %p140 = pneg %p55
      $region22: #{bottleneck_odconv_forward.3} parent=15 // pred_check_branch
        %142 = sbr.rel (%p140) target = $region24
      $region23: #{bottleneck_odconv_forward.3} parent=15 // pred_region
        %p143 = scmp.lt.s32.totalorder %s9, 1
        %s144 = scalar_select %p143, %s9, 1
        %s145 = smul.addr %s144, 36
        %s146 = smul.addr %s145, 8
        %s147 = scalar_lea.vmem %s1, %s146
      $region24: #{bottleneck_odconv_forward.3} parent=15 // pred_fallthru
        _
      // Predicated region
      $region25: #{bottleneck_odconv_forward.3} parent=15 // pred_check
        %p148 = pneg %p81
      $region26: #{bottleneck_odconv_forward.3} parent=15 // pred_check_branch
        %150 = sbr.rel (%p148) target = $region28
      $region27: #{bottleneck_odconv_forward.3} parent=15 // pred_region
        %p151 = scmp.lt.s32.totalorder %s9, 1
        %s152 = scalar_select %p151, %s9, 1
        %s153 = smul.addr %s152, 8
        %s154 = smul.addr %s153, 8
        %s155 = scalar_lea.vmem %s2, %s154
      $region28: #{bottleneck_odconv_forward.3} parent=15 // pred_fallthru
        _
    $region16: #{bottleneck_odconv_forward.3} parent=5 // pred_fallthru
      _
    %p156 = scmp.le.s32.totalorder 1, %s9
    %p157 = scmp.lt.s32.totalorder %s9, 3
    %p158 = pnand %p156, %p157
    %p159 = pneg %p158
    // Predicated region
    $region29: #{bottleneck_odconv_forward.3} parent=5 // pred_check
      _
    $region30: #{bottleneck_odconv_forward.3} parent=5 // pred_check_branch
      %161 = sbr.rel (%p158) target = $region32
    $region31: #{bottleneck_odconv_forward.3} parent=5 // pred_region
      %s162 = ssub.s32 %s9, 1
      %p163 = scmp.lt.s32.totalorder %s14, 1
      %s164 = scalar_select %p163, %s14, 1
      %s165 = smul.addr %s164, 8
      %s166 = smul.addr %s165, 8
      %s167 = scalar_lea.vmem %s0, %s166
      %p168 = pneg %p35
      %p169 = pneg %p32
      %p170 = scmp.lt.s32.totalorder %s14, 1
      %s171 = scalar_select %p170, %s14, 1
      %s172 = smul.addr %s171, 36
      %s173 = smul.addr %s172, 8
      %s174 = scalar_lea.vmem %s1, %s173
      %p175 = pneg %p61
      %p176 = pneg %p58
      %p177 = scmp.lt.s32.totalorder %s14, 1
      %s178 = scalar_select %p177, %s14, 1
      %s179 = smul.addr %s178, 8
      %s180 = smul.addr %s179, 8
      %s181 = scalar_lea.vmem %s2, %s180
      %p182 = pneg %p87
      %p183 = pneg %p84
      %p184 = pneg %p113
      %p185 = pneg %p110
      %p186 = scmp.lt.s32.totalorder %s14, 1
      %s187 = scalar_select %p186, %s14, 1
      %s188 = smul.addr %s187, 8
      %s189 = smul.addr %s188, 8
      %s190 = scalar_lea.vmem %s3, %s189
      %p191 = scmp.lt.s32.totalorder %s14, 1
      %s192 = scalar_select %p191, %s14, 1
      %s193 = smul.addr %s192, 8
      %s194 = smul.addr %s193, 8
      %s195 = scalar_lea.vmem %s0, %s194
      %p196 = scmp.lt.s32.totalorder %s14, 1
      %s197 = scalar_select %p196, %s14, 1
      %s198 = smul.addr %s197, 36
      %s199 = smul.addr %s198, 8
      %s200 = scalar_lea.vmem %s1, %s199
      %p201 = scmp.lt.s32.totalorder %s14, 1
      %s202 = scalar_select %p201, %s14, 1
      %s203 = smul.addr %s202, 8
      %s204 = smul.addr %s203, 8
      %s205 = scalar_lea.vmem %s2, %s204
      %p206 = scmp.lt.s32.totalorder %s14, 1
      %s207 = scalar_select %p206, %s14, 1
      %s208 = smul.addr %s207, 8
      %s209 = smul.addr %s208, 8
      %s210 = scalar_lea.vmem %s3, %s209
      %v211 = vld [vmem:[%s195] sm:$0xff]
      %v212 = vld [vmem:[%s195 + $0x8] sm:$0xff]
      %v213 = vld [vmem:[%s195 + $0x10] sm:$0xff]
      %v214 = vld [vmem:[%s195 + $0x18] sm:$0xff]
      %v215 = vld [vmem:[%s195 + $0x20] sm:$0xff]
      %v216 = vld [vmem:[%s195 + $0x28] sm:$0xff]
      %v217 = vld [vmem:[%s195 + $0x30] sm:$0xff]
      %v218 = vld [vmem:[%s195 + $0x38] sm:$0xff]
      %v219 = vld [vmem:[%s200] sm:$0xff]
      %v220 = vld [vmem:[%s200 + $0x8] sm:$0xff]
      %v221 = vld [vmem:[%s200 + $0x10] sm:$0xff]
      %v222 = vld [vmem:[%s200 + $0x18] sm:$0xff]
      %v223 = vld [vmem:[%s200 + $0x20] sm:$0xff]
      %v224 = vld [vmem:[%s200 + $0x28] sm:$0xff]
      %v225 = vld [vmem:[%s200 + $0x30] sm:$0xff]
      %v226 = vld [vmem:[%s200 + $0x38] sm:$0xff]
      %v227 = vld [vmem:[%s200 + $0x40] sm:$0xff]
      %v228 = vld [vmem:[%s200 + $0x48] sm:$0xff]
      %v229 = vld [vmem:[%s200 + $0x50] sm:$0xff]
      %v230 = vld [vmem:[%s200 + $0x58] sm:$0xff]
      %v231 = vld [vmem:[%s200 + $0x60] sm:$0xff]
      %v232 = vld [vmem:[%s200 + $0x68] sm:$0xff]
      %v233 = vld [vmem:[%s200 + $0x70] sm:$0xff]
      %v234 = vld [vmem:[%s200 + $0x78] sm:$0xff]
      %v235 = vld [vmem:[%s200 + $0x80] sm:$0xff]
      %v236 = vld [vmem:[%s200 + $0x88] sm:$0xff]
      %v237 = vld [vmem:[%s200 + $0x90] sm:$0xff]
      %v238 = vld [vmem:[%s200 + $0x98] sm:$0xff]
      %v239 = vld [vmem:[%s200 + $0xa0] sm:$0xff]
      %v240 = vld [vmem:[%s200 + $0xa8] sm:$0xff]
      %v241 = vld [vmem:[%s200 + $0xb0] sm:$0xff]
      %v242 = vld [vmem:[%s200 + $0xb8] sm:$0xff]
      %v243 = vld [vmem:[%s200 + $0xc0] sm:$0xff]
      %v244 = vld [vmem:[%s200 + $0xc8] sm:$0xff]
      %v245 = vld [vmem:[%s200 + $0xd0] sm:$0xff]
      %v246 = vld [vmem:[%s200 + $0xd8] sm:$0xff]
      %v247 = vld [vmem:[%s200 + $0xe0] sm:$0xff]
      %v248 = vld [vmem:[%s200 + $0xe8] sm:$0xff]
      %v249 = vld [vmem:[%s200 + $0xf0] sm:$0xff]
      %v250 = vld [vmem:[%s200 + $0xf8] sm:$0xff]
      %v251 = vld [vmem:[%s200 + $0x100] sm:$0xff]
      %v252 = vld [vmem:[%s200 + $0x108] sm:$0xff]
      %v253 = vld [vmem:[%s200 + $0x110] sm:$0xff]
      %v254 = vld [vmem:[%s200 + $0x118] sm:$0xff]
      %v255 = vld [vmem:[%s205] sm:$0xff]
      %v256 = vld [vmem:[%s205 + $0x8] sm:$0xff]
      %v257 = vld [vmem:[%s205 + $0x10] sm:$0xff]
      %v258 = vld [vmem:[%s205 + $0x18] sm:$0xff]
      %v259 = vld [vmem:[%s205 + $0x20] sm:$0xff]
      %v260 = vld [vmem:[%s205 + $0x28] sm:$0xff]
      %v261 = vld [vmem:[%s205 + $0x30] sm:$0xff]
      %v262 = vld [vmem:[%s205 + $0x38] sm:$0xff]
      %vm263 = vcmask 130048
      %v265 = vsel %vm263, %v212, 0
      %v268 = vsel %vm263, %v214, 0
      %v271 = vsel %vm263, %v216, 0
      %v274 = vsel %vm263, %v218, 0
      %276 = vmatpush.msra.mxu0 %v249
      %277 = vmatpush.msra.mxu0 %v247
      %278 = vmatpush.msra.mxu0 %v245
      %279 = vmatpush.msra.mxu0 %v243
      %280 = vmatpush.msra.mxu0 %v241
      %281 = vmatpush.msra.mxu0 %v239
      %282 = vmatpush.msra.mxu0 %v237
      %283 = vmatpush.msra.mxu0 %v235
      %284 = vmatpush.msra.mxu0 %v233
      %285 = vmatpush.msra.mxu0 %v231
      %286 = vmatpush.msra.mxu0 %v229
      %287 = vmatpush.msra.mxu0 %v227
      %288 = vmatpush.msra.mxu0 %v225
      %289 = vmatpush.msra.mxu0 %v223
      %290 = vmatpush.msra.mxu0 %v221
      %291 = vmatpush.msra.mxu0 %v219
      %292 = vmatmul.f32.gmra.mxu0 %v211
      %v293 = vpop.f32.mrf.mxu0
      %v294 = vadd.f32 %v255, %v293
      %295 = vmatmul.f32.gmra.mxu0 %v213
      %v296 = vpop.f32.mrf.mxu0
      %v297 = vadd.f32 %v257, %v296
      %298 = vmatmul.f32.gmra.mxu0 %v215
      %v299 = vpop.f32.mrf.mxu0
      %v300 = vadd.f32 %v259, %v299
      %301 = vmatmul.f32.gmra.mxu0 %v217
      %v302 = vpop.f32.mrf.mxu0
      %v303 = vadd.f32 %v261, %v302
      %304 = vdwg.mxu0
      %305 = vmatpush.msra.mxu0 0.0
      %306 = vmatpush.msra.mxu0 0.0
      %307 = vmatpush.msra.mxu0 0.0
      %308 = vmatpush.msra.mxu0 0.0
      %309 = vmatpush.msra.mxu0 0.0
      %310 = vmatpush.msra.mxu0 0.0
      %311 = vmatpush.msra.mxu0 0.0
      %312 = vmatpush.msra.mxu0 0.0
      %313 = vmatpush.msra.mxu0 0.0
      %314 = vmatpush.msra.mxu0 0.0
      %315 = vmatpush.msra.mxu0 0.0
      %316 = vmatpush.msra.mxu0 0.0
      %317 = vmatpush.msra.mxu0 0.0
      %318 = vmatpush.msra.mxu0 0.0
      %319 = vmatpush.msra.mxu0 %v253
      %320 = vmatpush.msra.mxu0 %v251
      %321 = vmatmul.f32.gmra.mxu0 %v265
      %v322 = vpop.f32.mrf.mxu0
      %v323 = vadd.f32 %v294, %v322
      %324 = vmatmul.f32.gmra.mxu0 %v268
      %v325 = vpop.f32.mrf.mxu0
      %v326 = vadd.f32 %v297, %v325
      %327 = vmatmul.f32.gmra.mxu0 %v271
      %v328 = vpop.f32.mrf.mxu0
      %v329 = vadd.f32 %v300, %v328
      %330 = vmatmul.f32.gmra.mxu0 %v274
      %v331 = vpop.f32.mrf.mxu0
      %v332 = vadd.f32 %v303, %v331
      %333 = vdwg.mxu0
      %334 = vmatpush.msra.mxu0 %v250
      %335 = vmatpush.msra.mxu0 %v248
      %336 = vmatpush.msra.mxu0 %v246
      %337 = vmatpush.msra.mxu0 %v244
      %338 = vmatpush.msra.mxu0 %v242
      %339 = vmatpush.msra.mxu0 %v240
      %340 = vmatpush.msra.mxu0 %v238
      %341 = vmatpush.msra.mxu0 %v236
      %342 = vmatpush.msra.mxu0 %v234
      %343 = vmatpush.msra.mxu0 %v232
      %344 = vmatpush.msra.mxu0 %v230
      %345 = vmatpush.msra.mxu0 %v228
      %346 = vmatpush.msra.mxu0 %v226
      %347 = vmatpush.msra.mxu0 %v224
      %348 = vmatpush.msra.mxu0 %v222
      %349 = vmatpush.msra.mxu0 %v220
      %350 = vmatmul.f32.gmra.mxu0 %v211
      %v351 = vpop.f32.mrf.mxu0
      %v352 = vadd.f32 %v256, %v351
      %353 = vmatmul.f32.gmra.mxu0 %v213
      %v354 = vpop.f32.mrf.mxu0
      %v355 = vadd.f32 %v258, %v354
      %356 = vmatmul.f32.gmra.mxu0 %v215
      %v357 = vpop.f32.mrf.mxu0
      %v358 = vadd.f32 %v260, %v357
      %359 = vmatmul.f32.gmra.mxu0 %v217
      %v360 = vpop.f32.mrf.mxu0
      %v361 = vadd.f32 %v262, %v360
      %362 = vdwg.mxu0
      %363 = vmatpush.msra.mxu0 0.0
      %364 = vmatpush.msra.mxu0 0.0
      %365 = vmatpush.msra.mxu0 0.0
      %366 = vmatpush.msra.mxu0 0.0
      %367 = vmatpush.msra.mxu0 0.0
      %368 = vmatpush.msra.mxu0 0.0
      %369 = vmatpush.msra.mxu0 0.0
      %370 = vmatpush.msra.mxu0 0.0
      %371 = vmatpush.msra.mxu0 0.0
      %372 = vmatpush.msra.mxu0 0.0
      %373 = vmatpush.msra.mxu0 0.0
      %374 = vmatpush.msra.mxu0 0.0
      %375 = vmatpush.msra.mxu0 0.0
      %376 = vmatpush.msra.mxu0 0.0
      %377 = vmatpush.msra.mxu0 %v254
      %378 = vmatpush.msra.mxu0 %v252
      %379 = vmatmul.f32.gmra.mxu0 %v265
      %v380 = vpop.f32.mrf.mxu0
      %v381 = vadd.f32 %v352, %v380
      %382 = vmatmul.f32.gmra.mxu0 %v268
      %v383 = vpop.f32.mrf.mxu0
      %v384 = vadd.f32 %v355, %v383
      %385 = vmatmul.f32.gmra.mxu0 %v271
      %v386 = vpop.f32.mrf.mxu0
      %v387 = vadd.f32 %v358, %v386
      %388 = vmatmul.f32.gmra.mxu0 %v274
      %v389 = vpop.f32.mrf.mxu0
      %v390 = vadd.f32 %v361, %v389
      %391 = vdwg.mxu0
      %392 = vst [vmem:[%s210] sm:$0xff] %v323
      %393 = vst [vmem:[%s210 + $0x8] sm:$0xff] %v381
      %394 = vst [vmem:[%s210 + $0x10] sm:$0xff] %v326
      %395 = vst [vmem:[%s210 + $0x18] sm:$0xff] %v384
      %396 = vst [vmem:[%s210 + $0x20] sm:$0xff] %v329
      %397 = vst [vmem:[%s210 + $0x28] sm:$0xff] %v387
      %398 = vst [vmem:[%s210 + $0x30] sm:$0xff] %v332
      %399 = vst [vmem:[%s210 + $0x38] sm:$0xff] %v390
      %p400 = scmp.lt.s32.totalorder %s14, 1
      %s401 = scalar_select %p400, %s14, 1
      %s402 = smul.addr %s401, 8
      %s403 = smul.addr %s402, 8
      %s404 = scalar_lea.vmem %s3, %s403
      // Predicated region
      $region33: #{bottleneck_odconv_forward.3} parent=31 // pred_check
        %p405 = pneg %p110
      $region34: #{bottleneck_odconv_forward.3} parent=31 // pred_check_branch
        %407 = sbr.rel (%p405) target = $region36
      $region35: #{bottleneck_odconv_forward.3} parent=31 // pred_region
        _
      $region36: #{bottleneck_odconv_forward.3} parent=31 // pred_fallthru
        _
    $region32: #{bottleneck_odconv_forward.3} parent=5 // pred_fallthru
      _
    %p408 = scmp.le.s32.totalorder 2, %s9
    // Predicated region
    $region37: #{bottleneck_odconv_forward.3} parent=5 // pred_check
      %p409 = pneg %p408
    $region38: #{bottleneck_odconv_forward.3} parent=5 // pred_check_branch
      %411 = sbr.rel (%p409) target = $region40
    $region39: #{bottleneck_odconv_forward.3} parent=5 // pred_region
      %s412 = ssub.s32 %s9, 2
      // Predicated region
      $region41: #{bottleneck_odconv_forward.3} parent=39 // pred_check
        %p413 = pneg %p116
      $region42: #{bottleneck_odconv_forward.3} parent=39 // pred_check_branch
        %415 = sbr.rel (%p413) target = $region44
      $region43: #{bottleneck_odconv_forward.3} parent=39 // pred_region
        %p416 = scmp.lt.s32.totalorder %s15, 1
        %s417 = scalar_select %p416, %s15, 1
        %s418 = smul.addr %s417, 8
        %s419 = smul.addr %s418, 8
        %s420 = scalar_lea.vmem %s3, %s419
      $region44: #{bottleneck_odconv_forward.3} parent=39 // pred_fallthru
        _
    $region40: #{bottleneck_odconv_forward.3} parent=5 // pred_fallthru
      _
  $region6: #{bottleneck_odconv_forward.3} parent=0 // loop_footer
    %s13 = sadd.s32 1, %s9
  $region7: #{bottleneck_odconv_forward.3} parent=0 // loop_footer_branch
    %8 = sbr.rel target = $region3
  $region8: #{bottleneck_odconv_forward.3} parent=0 // loop_exit
    _

</llo_original>
